<compile_context>
chip_gen: v7x
topology: tpu7x:2x2x1
jax: 0.10.0
libtpu: 0.0.40
codegen_flags: <defaults>
</compile_context>

<pallas_src>
import functools

import jax
import jax.numpy as jnp
from jax.experimental import pallas as pl
from jax.experimental.pallas import tpu as pltpu

_LANE = 128
# Target total live VMEM: 2x dbl-buffered input + 2x dbl-buffered output
# (io dtype) + ~3 full-block f32 intermediates.
_VMEM_BUDGET = 24 * 1024 * 1024


def _softmax_axis1_kernel(x_ref, o_ref, *, w_total, w_tile, mask_lanes):
    # Block: (Cb, H, Wt). Softmax over H (axis 1); independent per (c, w) column.
    xin = x_ref[...]
    if mask_lanes:
        # Zero lanes past the true W extent (boundary tile reads unspecified
        # data). Zero columns give a finite 1/H softmax and their stores are
        # discarded by Pallas's boundary masking.
        base = pl.program_id(1) * w_tile
        lane = jax.lax.broadcasted_iota(jnp.int32, xin.shape, 2)
        xin = jnp.where(lane < (w_total - base), xin, jnp.zeros_like(xin))
    m = jnp.max(xin, axis=1, keepdims=True)            # native-dtype max (sublane reduce)
    e = jnp.exp((xin - m).astype(jnp.float32))         # f32 exp/sum for accuracy
    s = jnp.sum(e, axis=1, keepdims=True)
    inv = pl.reciprocal(s, approx=False)               # exact; approx=True -> EUP fast path
    o_ref[...] = (e * inv).astype(o_ref.dtype)


def _largest_divisor_leq(n, cap):
    cap = max(1, min(n, cap))
    for d in range(cap, 0, -1):
        if n % d == 0:
            return d
    return 1


def _pick_tiles(C, H, W, itemsize):
    """Choose (Cb, Wt, vmem_limit_bytes) — W-contiguity first, then pack classes."""
    per_elem = 4 * itemsize + 3 * 4          # dbl-buffered in+out + ~3 f32 temps
    max_block_elems = max(1, _VMEM_BUDGET // per_elem)

    if W <= _LANE:
        Wt = W                                # full-dim last axis is always legal
    else:
        w_groups = pl.cdiv(W, _LANE)
        per_group = H * _LANE
        # TODO(synk): for very tall H (H*128 elems > budget) the full H column
        # still lives in one block; a two-pass / online softmax over H tiles
        # would be needed to bound VMEM for H >~ 4K f32.
        wt_groups = max(1, min(w_groups, max_block_elems // per_group))
        Wt = wt_groups * _LANE

    block_elems = H * Wt
    Cb = _largest_divisor_leq(C, max(1, max_block_elems // block_elems))

    # Make sure a 2-TC chip (v7x) has >= 2 programs on a parallel axis.
    if (C // Cb) * pl.cdiv(W, Wt) == 1:
        if C > 1:
            Cb = _largest_divisor_leq(C, C // 2)
        elif W > _LANE:
            Wt = max(_LANE, (pl.cdiv(W, _LANE) // 2) * _LANE)

    live = 4 * Cb * H * Wt * itemsize + 3 * Cb * H * Wt * 4
    vmem_limit = int(min(48 * 1024 * 1024,
                         max(32 * 1024 * 1024, int(live * 1.5) + (1 << 20))))
    return Cb, Wt, vmem_limit


def dice_loss_forward(prediction, label, num_classes):
    """Mirrors DiceLoss(num_classes).forward(prediction, label)."""
    assert prediction.shape == label.shape
    C = prediction.shape[0]
    assert C == num_classes
    _, H, W = prediction.shape
    dtype = prediction.dtype
    itemsize = jnp.dtype(dtype).itemsize

    Cb, Wt, vmem_limit = _pick_tiles(C, H, W, itemsize)
    grid = (C // Cb, pl.cdiv(W, Wt))
    mask_lanes = (W % Wt) != 0               # ragged / past-the-end lanes exist

    kernel = functools.partial(
        _softmax_axis1_kernel, w_total=W, w_tile=Wt, mask_lanes=mask_lanes)

    softmaxed = pl.pallas_call(
        kernel,
        out_shape=jax.ShapeDtypeStruct((C, H, W), dtype),
        grid=grid,
        in_specs=[pl.BlockSpec((Cb, H, Wt), lambda c, w: (c, 0, w))],
        out_specs=pl.BlockSpec((Cb, H, Wt), lambda c, w: (c, 0, w)),
        compiler_params=pltpu.CompilerParams(
            dimension_semantics=("parallel", "parallel"),
            vmem_limit_bytes=vmem_limit),
        cost_estimate=pl.CostEstimate(
            flops=4 * C * H * W,
            transcendentals=C * H * W,
            bytes_accessed=2 * C * H * W * itemsize),
    )(prediction)

    # TODO(synk): the reference forward truncates after the softmax (it never
    # computes a dice score and implicitly returns None); we return the
    # softmax-normalized prediction instead of faking a loss value. `label` is
    # only shape-checked, matching the reference.
    return softmaxed


if __name__ == "__main__":
    num_classes = 4
    C, H, W = num_classes, 16, 16

    key = jax.random.PRNGKey(0)
    k_pred, k_lab = jax.random.split(key)
    prediction = jax.random.normal(k_pred, (C, H, W), dtype=jnp.float32)
    label = (jax.random.uniform(k_lab, (C, H, W)) > 0.5).astype(jnp.float32)

    out = dice_loss_forward(prediction, label, num_classes)
    out = jax.block_until_ready(out)

    ref = jax.nn.softmax(prediction, axis=1)
    assert out.shape == prediction.shape and out.dtype == prediction.dtype
    assert jnp.allclose(out, ref, atol=1e-5, rtol=1e-5)

    # Ragged-W path: no wrapper pad/slice; boundary lanes masked in-kernel.
    C2, H2, W2 = 3, 16, 200
    p2 = jax.random.normal(jax.random.PRNGKey(1), (C2, H2, W2), dtype=jnp.float32)
    l2 = jnp.zeros_like(p2)
    out2 = jax.block_until_ready(dice_loss_forward(p2, l2, C2))
    assert jnp.allclose(out2, jax.nn.softmax(p2, axis=1), atol=1e-5, rtol=1e-5)

    print("KERNEL_OK")
</pallas_src>

<mosaic_0001>
module attributes {stable_mosaic.version = 11 : i64} {
  func.func @_softmax_axis1_kernel(%arg0: i32, %arg1: i32, %arg2: memref<2x16x16xf32, #tpu.memory_space<vmem>>, %arg3: memref<2x16x16xf32, #tpu.memory_space<vmem>>) attributes {dimension_semantics = [#tpu.dimension_semantics<parallel>, #tpu.dimension_semantics<parallel>], iteration_bounds = array<i64: 2, 1>, scalar_prefetch = 0 : i64, scratch_operands = 0 : i64, tpu.core_type = #tpu.core_type<tc>, window_params = [{transform_indices = @transform_0, window_bounds = array<i64: 2, 16, 16>}, {transform_indices = @transform_1, window_bounds = array<i64: 2, 16, 16>}]} {
    %c0 = arith.constant 0 : index
    %c0_0 = arith.constant 0 : index
    %c0_1 = arith.constant 0 : index
    %0 = vector.load %arg2[%c0, %c0_0, %c0_1] : memref<2x16x16xf32, #tpu.memory_space<vmem>>, vector<2x16x16xf32>
    %cst = arith.constant dense<0xFF800000> : vector<2x16xf32>
    %1 = vector.multi_reduction <maximumf>, %0, %cst [1] : vector<2x16x16xf32> to vector<2x16xf32>
    %2 = vector.shape_cast %1 : vector<2x16xf32> to vector<2x1x16xf32>
    %3 = vector.broadcast %2 : vector<2x1x16xf32> to vector<2x16x16xf32>
    %4 = arith.subf %0, %3 : vector<2x16x16xf32>
    %5 = math.exp %4 : vector<2x16x16xf32>
    %cst_2 = arith.constant dense<0.000000e+00> : vector<2x16xf32>
    %6 = vector.multi_reduction <add>, %5, %cst_2 [1] : vector<2x16x16xf32> to vector<2x16xf32>
    %7 = vector.shape_cast %6 : vector<2x16xf32> to vector<2x1x16xf32>
    %8 = tpu.reciprocal %7 : vector<2x1x16xf32> -> vector<2x1x16xf32>
    %9 = vector.broadcast %8 : vector<2x1x16xf32> to vector<2x16x16xf32>
    %10 = arith.mulf %5, %9 : vector<2x16x16xf32>
    %c0_3 = arith.constant 0 : index
    %c0_4 = arith.constant 0 : index
    %c0_5 = arith.constant 0 : index
    %11 = vector.load %arg3[%c0_3, %c0_4, %c0_5] : memref<2x16x16xf32, #tpu.memory_space<vmem>>, vector<2x16x16xf32>
    tpu.vector_store %arg3[%c0_3, %c0_4, %c0_5], %10 {strides = array<i32>} : memref<2x16x16xf32, #tpu.memory_space<vmem>>, vector<2x16x16xf32>,
    return
  }
  func.func @transform_0(%arg0: i32, %arg1: i32) -> (i32, i32, i32) {
    %c0_i32 = arith.constant 0 : i32
    %c0_i32_0 = arith.constant 0 : i32
    return %arg0, %c0_i32, %arg1 : i32, i32, i32
  }
  func.func @transform_1(%arg0: i32, %arg1: i32) -> (i32, i32, i32) {
    %c0_i32 = arith.constant 0 : i32
    %c0_i32_0 = arith.constant 0 : i32
    return %arg0, %c0_i32, %arg1 : i32, i32, i32
  }
}

</mosaic_0001>

<llo_original>
// kernel: tpu_custom_call.1
$region0: #{tpu_custom_call.1}
  #allocation0 [shape = 'u32[]', space=smem, size = 0x4, offset = 0x4, fixed_abs, tag = 'smem constant byte address 0x4 - core index']
  #allocation1 [shape = 'u32[144,128]{1,0:T(1,128)}', space=vmem, size = 0x12000, scoped, tag = 'internal scratch']
  %s0 = inlined_call_operand.hbm [shape: f32[4,16,16], index: 0, kind: input, shape index: {}]
  %s1 = inlined_call_operand.hbm [shape: f32[4,16,16], index: 1, kind: output, shape index: {}]
  %s2 = sld [smem:[#allocation0]]
  $region41: #{tpu_custom_call.1} parent=0
    _
  %s4 = ssub.s32 1, %s2
  %s5 = scalar_select 0, %s4, %s2
  $region1: #{tpu_custom_call.1} parent=0
    #allocation2 [shape = 'u8[32768]{0}', space=vmem, size = 0x8000, scoped, tag = 'input window, operand 0']
    #allocation3 [shape = 's32[2]{0}', space=sflag, size = 0x8, scoped, tag = 'scoped memory for tpu_custom_call.1']
    #allocation4 [shape = 's32[2]{0}', space=sflag, size = 0x8, scoped, tag = 'scoped memory for tpu_custom_call.1']
    #allocation5 [shape = 'u8[32768]{0}', space=vmem, size = 0x8000, scoped, tag = 'output window, operand 0']
    %6 = vsyncpa [#allocation3], 0
    %s7 = scalar_lea.sflag [#allocation3], 1
    %8 = vsyncpa %s7, 0
    %9 = vsyncpa [#allocation4], 0
    %s10 = scalar_lea.sflag [#allocation4], 1
    %11 = vsyncpa %s10, 0
    loop: start=0, step=1, limit=4
    $region2: #{tpu_custom_call.1} parent=1 // loop_pre_header
      _
    $region3: #{tpu_custom_call.1} parent=1 // loop_header
      %s13 = sphi 0, %s17
      %p14 = scmp.ge.s32.totalorder %s13, 4
      %s20 = sphi 0, %s32
      %s21 = sphi 0, %s28
      %s22 = sphi 0, %s20
      %s23 = sphi 0, %s21
      %s24 = sphi 0, %s22
      %s25 = sphi 0, %s23
      %s37 = sphi 0, %s39
      %s40 = sphi 0, %s37
      %s41 = sphi 0, %s40
      %s57 = sphi 0, %s41
      %s65 = sphi 0, %s67
      %s68 = sphi 0, %s65
      %s69 = sphi 0, %s68
      %s85 = sphi 0, %s69
    $region4: #{tpu_custom_call.1} parent=1 // loop_header_branch
      %16 = sbr.rel (%p14) target = $region8
    $region5: #{tpu_custom_call.1} parent=1 // loop_body
      %s18 = ssub.s32 %s13, 1
      %s19 = ssub.s32 %s13, 2
      %s26 = sadd.s32 1, %s21
      %p27 = scmp.ge.s32.totalorder %s26, 1
      %s28 = scalar_select %p27, 0, %s26
      %s29 = sadd.s32 1, %s20
      %s30 = scalar_select %p27, %s29, %s20
      %p31 = scmp.ge.s32.totalorder %s30, 2
      %s32 = scalar_select %p31, 0, %s30
      %s33 = ssub.s32 %s20, %s32
      %s34 = ssub.s32 %s21, %s28
      %s35 = sor.u32 %s33, %s34
      %p36 = scmp.eq.s32.totalorder %s35, 0
      %s38 = sadd.s32 %s37, 1
      %s39 = scalar_select %p36, %s37, %s38
      %p42 = pneg %p36
      %p43 = scmp.eq.s32.totalorder %s13, 1
      %p44 = por %p42, %p43
      %p45 = scmp.ne.s32.totalorder %s37, %s40
      %p46 = scmp.eq.s32.totalorder %s13, 0
      %p47 = por %p45, %p46
      %p48 = scmp.ne.s32.totalorder %s37, %s40
      %p49 = scmp.eq.s32.totalorder %s18, 1
      %p50 = por %p48, %p49
      %p51 = scmp.ne.s32.totalorder %s40, %s41
      %p52 = scmp.eq.s32.totalorder %s18, 0
      %p53 = por %p51, %p52
      %p54 = scmp.ne.s32.totalorder %s40, %s41
      %p55 = scmp.eq.s32.totalorder %s19, 1
      %p56 = por %p54, %p55
      %p58 = scmp.ne.s32.totalorder %s41, %s57
      %p59 = scmp.eq.s32.totalorder %s19, 0
      %p60 = por %p58, %p59
      %s61 = ssub.s32 %s20, %s32
      %s62 = ssub.s32 %s21, %s28
      %s63 = sor.u32 %s61, %s62
      %p64 = scmp.eq.s32.totalorder %s63, 0
      %s66 = sadd.s32 %s65, 1
      %s67 = scalar_select %p64, %s65, %s66
      %p70 = pneg %p64
      %p71 = scmp.eq.s32.totalorder %s13, 1
      %p72 = por %p70, %p71
      %p73 = scmp.ne.s32.totalorder %s65, %s68
      %p74 = scmp.eq.s32.totalorder %s13, 0
      %p75 = por %p73, %p74
      %p76 = scmp.ne.s32.totalorder %s65, %s68
      %p77 = scmp.eq.s32.totalorder %s18, 1
      %p78 = por %p76, %p77
      %p79 = scmp.ne.s32.totalorder %s68, %s69
      %p80 = scmp.eq.s32.totalorder %s18, 0
      %p81 = por %p79, %p80
      %p82 = scmp.ne.s32.totalorder %s68, %s69
      %p83 = scmp.eq.s32.totalorder %s19, 1
      %p84 = por %p82, %p83
      %p86 = scmp.ne.s32.totalorder %s69, %s85
      %p87 = scmp.eq.s32.totalorder %s19, 0
      %p88 = por %p86, %p87
      %p89 = scmp.le.s32.totalorder 1, %s13
      %p90 = scmp.lt.s32.totalorder %s13, 3
      %p91 = pnand %p89, %p90
      %p92 = pneg %p91
      // Predicated region
      $region9: #{tpu_custom_call.1} parent=5 // pred_check
        _
      $region10: #{tpu_custom_call.1} parent=5 // pred_check_branch
        %94 = sbr.rel (%p91) target = $region12
      $region11: #{tpu_custom_call.1} parent=5 // pred_region
        %s95 = ssub.s32 %s13, 1
      $region12: #{tpu_custom_call.1} parent=5 // pred_fallthru
        _
      %p96 = scmp.lt.s32.totalorder %s13, 2
      // Predicated region
      $region13: #{tpu_custom_call.1} parent=5 // pred_check
        %p97 = pneg %p96
      $region14: #{tpu_custom_call.1} parent=5 // pred_check_branch
        %99 = sbr.rel (%p97) target = $region16
      $region15: #{tpu_custom_call.1} parent=5 // pred_region
        // Predicated region
        $region17: #{tpu_custom_call.1} parent=15 // pred_check
          %p100 = pneg %p47
        $region18: #{tpu_custom_call.1} parent=15 // pred_check_branch
          %102 = sbr.rel (%p100) target = $region20
        $region19: #{tpu_custom_call.1} parent=15 // pred_region
          %s103 = sand.u32 %s37, 1
          %s104 = scalar_lea.sflag [#allocation3], %s103
          %s105 = sand.u32 %s37, 1
          %s106 = smul.addr %s105, 32
          %s107 = scalar_lea.vmem [#allocation2], %s106
          %s108 = smul.u32 2, %s20
          %s110 = ssub.s32 512, 512
          %111 = vsyncadd %s104, %s110
          %s112 = smul.addr %s108, 2
          %s113 = sadd.s32 %s21, %s112
          %s114 = smul.addr %s113, 128
          %s115 = scalar_lea.hbm %s0, %s114
          %s116 = sshll.u32 %s107, 4
          %s117 = int_to_ptr.vmem [resolvable:$true] %s116
          %122 = dma.hbm_to_vmem [thread:$0]  %s115, 512, %s117, %s104, 128, 128, 8
        $region20: #{tpu_custom_call.1} parent=15 // pred_fallthru
          _
      $region16: #{tpu_custom_call.1} parent=5 // pred_fallthru
        _
      %p123 = scmp.le.s32.totalorder 1, %s13
      %p124 = scmp.lt.s32.totalorder %s13, 3
      %p125 = pnand %p123, %p124
      %p126 = pneg %p125
      // Predicated region
      $region21: #{tpu_custom_call.1} parent=5 // pred_check
        _
      $region22: #{tpu_custom_call.1} parent=5 // pred_check_branch
        %128 = sbr.rel (%p125) target = $region24
      $region23: #{tpu_custom_call.1} parent=5 // pred_region
        %s129 = ssub.s32 %s13, 1
        %s130 = sand.u32 %s40, 1
        %s131 = scalar_lea.sflag [#allocation3], %s130
        %s132 = sand.u32 %s40, 1
        %s133 = smul.addr %s132, 32
        %s134 = scalar_lea.vmem [#allocation2], %s133
        // Predicated region
        $region25: #{tpu_custom_call.1} parent=23 // pred_check
          %p135 = pneg %p53
        $region26: #{tpu_custom_call.1} parent=23 // pred_check_branch
          %137 = sbr.rel (%p135) target = $region28
        $region27: #{tpu_custom_call.1} parent=23 // pred_region
          %138 = dma.done %s131, 512
        $region28: #{tpu_custom_call.1} parent=23 // pred_fallthru
          _
        %s139 = sand.u32 %s40, 1
        %s140 = scalar_lea.sflag [#allocation3], %s139
        %s141 = sand.u32 %s40, 1
        %s142 = smul.addr %s141, 32
        %s143 = scalar_lea.vmem [#allocation2], %s142
        %p144 = pneg %p53
        %p145 = pneg %p50
        %p146 = pneg %p81
        %p147 = pneg %p78
        %s148 = sand.u32 %s68, 1
        %s149 = scalar_lea.sflag [#allocation4], %s148
        %s150 = sand.u32 %s68, 1
        %s151 = smul.addr %s150, 32
        %s152 = scalar_lea.vmem [#allocation5], %s151
        %s153 = smul.u32 2, %s22
        %s154 = smul.u32 2, %s22
        %v155 = vld [vmem:[%s134] sm:$0xff]
        %v156 = vld [vmem:[%s134 + $0x8] sm:$0xff]
        %v157 = vld [vmem:[%s134 + $0x10] sm:$0xff]
        %v158 = vld [vmem:[%s134 + $0x18] sm:$0xff]
        %vm159 = vcmask 130048
        %v160 = vsel %vm159, %v155, -inf
        %v161 = vsel %vm159, %v156, -inf
        %v162 = vmax.f32 %v160, %v161
        %v163 = vrot.slane %v162, 4
        %v164 = vmax.f32 %v162, %v163
        %v165 = vrot.slane %v164, 2
        %v166 = vmax.f32 %v164, %v165
        %v167 = vrot.slane %v166, 1
        %v168 = vmax.f32 %v166, %v167
        %v169 = vsel %vm159, %v157, -inf
        %v170 = vsel %vm159, %v158, -inf
        %v171 = vmax.f32 %v169, %v170
        %v172 = vrot.slane %v171, 4
        %v173 = vmax.f32 %v171, %v172
        %v174 = vrot.slane %v173, 2
        %v175 = vmax.f32 %v173, %v174
        %v176 = vrot.slane %v175, 1
        %v177 = vmax.f32 %v175, %v176
        %v178 = vsub.f32 %v155, %v168
        %v179 = vsub.f32 %v156, %v168
        %v180 = vsub.f32 %v157, %v177
        %v181 = vsub.f32 %v158, %v177
        %v182 = vmul.f32 %v178, 1.442695
        %v183 = vpow.pop %v182
        %v184 = vmul.f32 %v179, 1.442695
        %v185 = vpow.pop %v184
        %v186 = vmul.f32 %v180, 1.442695
        %v187 = vpow.pop %v186
        %v188 = vmul.f32 %v181, 1.442695
        %v189 = vpow.pop %v188
        %v190 = vsel %vm159, %v183, 0.0
        %v191 = vsel %vm159, %v185, 0.0
        %v192 = vadd.f32 %v190, %v191
        %v193 = vrot.slane %v192, 4
        %v194 = vadd.f32 %v192, %v193
        %v195 = vrot.slane %v194, 2
        %v196 = vadd.f32 %v194, %v195
        %v197 = vrot.slane %v196, 1
        %v198 = vadd.f32 %v196, %v197
        %v199 = vsel %vm159, %v187, 0.0
        %v200 = vsel %vm159, %v189, 0.0
        %v201 = vadd.f32 %v199, %v200
        %v202 = vrot.slane %v201, 4
        %v203 = vadd.f32 %v201, %v202
        %v204 = vrot.slane %v203, 2
        %v205 = vadd.f32 %v203, %v204
        %v206 = vrot.slane %v205, 1
        %v207 = vadd.f32 %v205, %v206
        %v208 = vrcp.pop %v198
        %v209 = vrcp.pop %v207
        %v210 = vmul.f32 %v183, %v208
        %v211 = vmul.f32 %v185, %v208
        %v212 = vmul.f32 %v187, %v209
        %v213 = vmul.f32 %v189, %v209
        %214 = vst.msk [vmem:[%s152] sm:$0xff] %vm159, %v210
        %215 = vst.msk [vmem:[%s152 + $0x8] sm:$0xff] %vm159, %v211
        %216 = vst.msk [vmem:[%s152 + $0x10] sm:$0xff] %vm159, %v212
        %217 = vst.msk [vmem:[%s152 + $0x18] sm:$0xff] %vm159, %v213
        %s218 = sand.u32 %s68, 1
        %s219 = scalar_lea.sflag [#allocation4], %s218
        %s220 = sand.u32 %s68, 1
        %s221 = smul.addr %s220, 32
        %s222 = scalar_lea.vmem [#allocation5], %s221
        // Predicated region
        $region29: #{tpu_custom_call.1} parent=23 // pred_check
          %p223 = pneg %p78
        $region30: #{tpu_custom_call.1} parent=23 // pred_check_branch
          %225 = sbr.rel (%p223) target = $region32
        $region31: #{tpu_custom_call.1} parent=23 // pred_region
          %s226 = smul.u32 2, %s22
          %s228 = ssub.s32 512, 512
          %229 = vsyncadd %s219, %s228
          %s230 = smul.addr %s226, 2
          %s231 = sadd.s32 %s23, %s230
          %s232 = smul.addr %s231, 128
          %s233 = scalar_lea.hbm %s1, %s232
          %s234 = sshll.u32 %s222, 4
          %s235 = int_to_ptr.vmem [resolvable:$true] %s234
          %240 = dma.vmem_to_hbm [thread:$0]  %s235, 512, %s233, %s219, 128, 128, 8
        $region32: #{tpu_custom_call.1} parent=23 // pred_fallthru
          _
      $region24: #{tpu_custom_call.1} parent=5 // pred_fallthru
        _
      %p241 = scmp.le.s32.totalorder 2, %s13
      // Predicated region
      $region33: #{tpu_custom_call.1} parent=5 // pred_check
        %p242 = pneg %p241
      $region34: #{tpu_custom_call.1} parent=5 // pred_check_branch
        %244 = sbr.rel (%p242) target = $region36
      $region35: #{tpu_custom_call.1} parent=5 // pred_region
        %s245 = ssub.s32 %s13, 2
        // Predicated region
        $region37: #{tpu_custom_call.1} parent=35 // pred_check
          %p246 = pneg %p84
        $region38: #{tpu_custom_call.1} parent=35 // pred_check_branch
          %248 = sbr.rel (%p246) target = $region40
        $region39: #{tpu_custom_call.1} parent=35 // pred_region
          %s249 = sand.u32 %s69, 1
          %s250 = scalar_lea.sflag [#allocation4], %s249
          %s251 = sand.u32 %s69, 1
          %s252 = smul.addr %s251, 32
          %s253 = scalar_lea.vmem [#allocation5], %s252
          %254 = dma.done %s250, 512
        $region40: #{tpu_custom_call.1} parent=35 // pred_fallthru
          _
      $region36: #{tpu_custom_call.1} parent=5 // pred_fallthru
        _
    $region6: #{tpu_custom_call.1} parent=1 // loop_footer
      %s17 = sadd.s32 1, %s13
    $region7: #{tpu_custom_call.1} parent=1 // loop_footer_branch
      %12 = sbr.rel target = $region3
    $region8: #{tpu_custom_call.1} parent=1 // loop_exit
      _
    %255 = vsyncpa [#allocation3], 1
    %s256 = scalar_lea.sflag [#allocation3], 1
    %257 = vsyncpa %s256, 1
    %258 = vsyncpa [#allocation4], 1
    %s259 = scalar_lea.sflag [#allocation4], 1
    %260 = vsyncpa %s259, 1

</llo_original>
